<compile_context>
chip_gen: v7x
topology: tpu7x:2x2x1
jax: 0.10.0
libtpu: 0.0.40
codegen_flags: <defaults>
</compile_context>

<pallas_src>
import math

import jax
import jax.numpy as jnp
from jax import lax
from jax.experimental import pallas as pl
from jax.experimental.pallas import tpu as pltpu


def _round_up(x, m):
    return (x + m - 1) // m * m


def _gelu_exact(x):
    # Matches F.gelu(..., approximate='none'): 0.5*x*(1+erf(x/sqrt(2)))
    return 0.5 * x * (1.0 + lax.erf(x * (1.0 / math.sqrt(2.0))))


def feedforward_kernel(x_ref, a1_ref, c1_ref, w1_ref, b1_ref,
                       w2_ref, b2_ref, a2_ref, c2_ref, o_ref, res_ref):
    f32 = jnp.float32
    md = w1_ref.dtype                                   # matmul operand dtype

    # aff1 (f32).  Stash the residual in VMEM scratch so it is not held in
    # vregs across both matmuls + GELU (avoids spills on the vst slot).
    y = a1_ref[...] * x_ref[...].astype(f32) + c1_ref[...]      # (tm, D)
    res_ref[...] = y

    # fc1: bf16 (or f32) operands, f32 accumulation; fused bias + exact GELU.
    h = jnp.dot(y.astype(md), w1_ref[...], preferred_element_type=f32)
    h = _gelu_exact(h + b1_ref[...])                             # (tm, H) f32

    # fc2
    z = jnp.dot(h.astype(md), w2_ref[...], preferred_element_type=f32)
    z = z + b2_ref[...]                                          # (tm, D) f32

    # aff2 + residual
    o_ref[...] = (a2_ref[...] * z + c2_ref[...] + res_ref[...]).astype(o_ref.dtype)


def feedforward_pallas(x, params, *, tm=256, matmul_dtype=jnp.bfloat16):
    """x: (B, N, D) float32.  params: dict produced by init_params."""
    B, N, D = x.shape
    H = params["w1"].shape[1]
    M = B * N

    # Row tile: multiple of 8 sublanes, no larger than (padded) row count.
    tm = max(8, _round_up(int(tm), 8))
    tm = min(tm, _round_up(M, 8))
    Mp = _round_up(M, tm)

    x2 = x.reshape(M, D)
    if Mp != M:
        x2 = jnp.pad(x2, ((0, Mp - M), (0, 0)))

    # Weights in the matmul dtype (bf16 by default: MXU fast path, half the
    # DMA bytes).  Affine params / biases stay f32.
    w1 = params["w1"].astype(matmul_dtype)
    w2 = params["w2"].astype(matmul_dtype)

    # Advisory cost estimate for XLA scheduling around the custom call.
    w_itemsize = jnp.dtype(matmul_dtype).itemsize
    flops = 4 * Mp * D * H + 10 * Mp * (D + H)
    bytes_accessed = (2 * Mp * D * 4                # x in, out
                      + (D * H + H * D) * w_itemsize  # W1, W2
                      + (4 * D + H) * 4)            # affines + biases

    # Whole-array, VMEM-resident spec for parameters (single copy, no
    # per-grid-step pipelining of the big W1/W2).
    resident = pl.BlockSpec(memory_space=pltpu.MemorySpace.VMEM)

    out2 = pl.pallas_call(
        feedforward_kernel,
        out_shape=jax.ShapeDtypeStruct((Mp, D), x.dtype),
        grid=(Mp // tm,),
        in_specs=[
            pl.BlockSpec((tm, D), lambda i: (i, 0)),   # x rows (pipelined)
            resident, resident,                        # alpha1, beta1
            resident, resident,                        # W1 (D,H), b1
            resident, resident,                        # W2 (H,D), b2
            resident, resident,                        # alpha2, beta2
        ],
        out_specs=pl.BlockSpec((tm, D), lambda i: (i, 0)),
        scratch_shapes=[pltpu.VMEM((tm, D), jnp.float32)],   # residual scratch
        compiler_params=pltpu.CompilerParams(
            dimension_semantics=("parallel",),
            vmem_limit_bytes=64 * 1024 * 1024,
        ),
        cost_estimate=pl.CostEstimate(
            flops=int(flops),
            transcendentals=int(Mp * H),
            bytes_accessed=int(bytes_accessed),
        ),
    )(x2,
      params["alpha1"], params["beta1"],
      w1, params["b1"],
      w2, params["b2"],
      params["alpha2"], params["beta2"])

    if Mp != M:
        out2 = out2[:M]
    return out2.reshape(B, N, D)


def feedforward_ref(x, p):
    """Pure-JAX reference mirroring the PyTorch module (all f32)."""
    y = p["alpha1"] * x + p["beta1"]
    residual = y
    h = y @ p["w1"] + p["b1"]
    h = _gelu_exact(h)
    z = h @ p["w2"] + p["b2"]
    z = p["alpha2"] * z + p["beta2"]
    return z + residual


def init_params(key, num_features, expansion_factor):
    D = num_features
    H = num_features * expansion_factor
    k1, k2, k3, k4 = jax.random.split(key, 4)
    # nn.Linear default init: U(-1/sqrt(fan_in), 1/sqrt(fan_in)); weights
    # stored here already transposed to (in, out).
    lim1 = 1.0 / math.sqrt(D)
    lim2 = 1.0 / math.sqrt(H)
    return {
        # AffineTransform init: alpha=1, beta=0 (PyTorch shape (1,1,D) -> (1,D))
        "alpha1": jnp.ones((1, D), jnp.float32),
        "beta1": jnp.zeros((1, D), jnp.float32),
        "alpha2": jnp.ones((1, D), jnp.float32),
        "beta2": jnp.zeros((1, D), jnp.float32),
        "w1": jax.random.uniform(k1, (D, H), jnp.float32, -lim1, lim1),
        "b1": jax.random.uniform(k2, (1, H), jnp.float32, -lim1, lim1),
        "w2": jax.random.uniform(k3, (H, D), jnp.float32, -lim2, lim2),
        "b2": jax.random.uniform(k4, (1, D), jnp.float32, -lim2, lim2),
    }


if __name__ == "__main__":
    # Small shapes: batch=2, seq=8, num_features=32, expansion=4 -> hidden=128
    B, N, D, E = 2, 8, 32, 4
    key = jax.random.PRNGKey(0)
    kx, kp = jax.random.split(key)
    x = jax.random.normal(kx, (B, N, D), jnp.float32)
    params = init_params(kp, D, E)

    ref = feedforward_ref(x, params)

    # Default path: bf16 matmul operands, f32 accumulation (relaxed tolerance).
    out_bf16 = jax.block_until_ready(feedforward_pallas(x, params))
    assert out_bf16.shape == (B, N, D)
    assert jnp.allclose(out_bf16, ref, atol=5e-2, rtol=5e-2)

    # Full-f32 path matches the reference tightly.
    out_f32 = jax.block_until_ready(
        feedforward_pallas(x, params, matmul_dtype=jnp.float32))
    assert jnp.allclose(out_f32, ref, atol=1e-5, rtol=1e-5)

    # Ragged row count (M = 10) exercises the row-padding path.
    x_odd = jax.random.normal(kx, (B, 5, D), jnp.float32)
    out_odd = jax.block_until_ready(
        feedforward_pallas(x_odd, params, matmul_dtype=jnp.float32))
    assert jnp.allclose(out_odd, feedforward_ref(x_odd, params),
                        atol=1e-5, rtol=1e-5)

    print("KERNEL_OK")
</pallas_src>

<mosaic_0001>
module attributes {stable_mosaic.version = 11 : i64} {
  func.func @feedforward_kernel(%arg0: i32, %arg1: memref<16x32xf32, #tpu.memory_space<vmem>>, %arg2: memref<1x32xf32, #tpu.memory_space<vmem>>, %arg3: memref<1x32xf32, #tpu.memory_space<vmem>>, %arg4: memref<32x128xbf16, #tpu.memory_space<vmem>>, %arg5: memref<1x128xf32, #tpu.memory_space<vmem>>, %arg6: memref<128x32xbf16, #tpu.memory_space<vmem>>, %arg7: memref<1x32xf32, #tpu.memory_space<vmem>>, %arg8: memref<1x32xf32, #tpu.memory_space<vmem>>, %arg9: memref<1x32xf32, #tpu.memory_space<vmem>>, %arg10: memref<16x32xf32, #tpu.memory_space<vmem>>, %arg11: memref<16x32xf32, #tpu.memory_space<vmem>>) attributes {dimension_semantics = [#tpu.dimension_semantics<parallel>], iteration_bounds = array<i64: 1>, scalar_prefetch = 0 : i64, scratch_operands = 1 : i64, tpu.core_type = #tpu.core_type<tc>, window_params = [{transform_indices = @transform_0, window_bounds = array<i64: 16, 32>}, {pipeline_mode = #tpu.pipeline_mode<synchronous>, transform_indices = @transform_1, window_bounds = array<i64: 1, 32>}, {pipeline_mode = #tpu.pipeline_mode<synchronous>, transform_indices = @transform_2, window_bounds = array<i64: 1, 32>}, {pipeline_mode = #tpu.pipeline_mode<synchronous>, transform_indices = @transform_3, window_bounds = array<i64: 32, 128>}, {pipeline_mode = #tpu.pipeline_mode<synchronous>, transform_indices = @transform_4, window_bounds = array<i64: 1, 128>}, {pipeline_mode = #tpu.pipeline_mode<synchronous>, transform_indices = @transform_5, window_bounds = array<i64: 128, 32>}, {pipeline_mode = #tpu.pipeline_mode<synchronous>, transform_indices = @transform_6, window_bounds = array<i64: 1, 32>}, {pipeline_mode = #tpu.pipeline_mode<synchronous>, transform_indices = @transform_7, window_bounds = array<i64: 1, 32>}, {pipeline_mode = #tpu.pipeline_mode<synchronous>, transform_indices = @transform_8, window_bounds = array<i64: 1, 32>}, {transform_indices = @transform_9, window_bounds = array<i64: 16, 32>}]} {
    %c0 = arith.constant 0 : index
    %c0_0 = arith.constant 0 : index
    %0 = vector.load %arg2[%c0, %c0_0] : memref<1x32xf32, #tpu.memory_space<vmem>>, vector<1x32xf32>
    %c0_1 = arith.constant 0 : index
    %c0_2 = arith.constant 0 : index
    %1 = vector.load %arg1[%c0_1, %c0_2] : memref<16x32xf32, #tpu.memory_space<vmem>>, vector<16x32xf32>
    %2 = vector.broadcast %0 : vector<1x32xf32> to vector<16x32xf32>
    %3 = arith.mulf %2, %1 : vector<16x32xf32>
    %c0_3 = arith.constant 0 : index
    %c0_4 = arith.constant 0 : index
    %4 = vector.load %arg3[%c0_3, %c0_4] : memref<1x32xf32, #tpu.memory_space<vmem>>, vector<1x32xf32>
    %5 = vector.broadcast %4 : vector<1x32xf32> to vector<16x32xf32>
    %6 = arith.addf %3, %5 : vector<16x32xf32>
    %c0_5 = arith.constant 0 : index
    %c0_6 = arith.constant 0 : index
    %7 = vector.load %arg11[%c0_5, %c0_6] : memref<16x32xf32, #tpu.memory_space<vmem>>, vector<16x32xf32>
    tpu.vector_store %arg11[%c0_5, %c0_6], %6 {strides = array<i32>} : memref<16x32xf32, #tpu.memory_space<vmem>>, vector<16x32xf32>,
    %8 = arith.truncf %6 : vector<16x32xf32> to vector<16x32xbf16>
    %c0_7 = arith.constant 0 : index
    %c0_8 = arith.constant 0 : index
    %9 = vector.load %arg4[%c0_7, %c0_8] : memref<32x128xbf16, #tpu.memory_space<vmem>>, vector<32x128xbf16>
    %cst = arith.constant dense<0.000000e+00> : vector<16x128xf32>
    %10 = tpu.matmul %8, %9, %cst {dimension_numbers = #tpu.dot_dimension_numbers<[1], [0], [0], [1], [0, 0, 1, 1], [], []>} : vector<16x32xbf16>, vector<32x128xbf16>, vector<16x128xf32> -> vector<16x128xf32>
    %c0_9 = arith.constant 0 : index
    %c0_10 = arith.constant 0 : index
    %11 = vector.load %arg5[%c0_9, %c0_10] : memref<1x128xf32, #tpu.memory_space<vmem>>, vector<1x128xf32>
    %12 = vector.broadcast %11 : vector<1x128xf32> to vector<16x128xf32>
    %13 = arith.addf %10, %12 : vector<16x128xf32>
    %cst_11 = arith.constant 5.000000e-01 : f32
    %14 = vector.broadcast %cst_11 : f32 to vector<16x128xf32>
    %15 = arith.mulf %14, %13 : vector<16x128xf32>
    %cst_12 = arith.constant 0.707106769 : f32
    %16 = vector.broadcast %cst_12 : f32 to vector<16x128xf32>
    %17 = arith.mulf %13, %16 : vector<16x128xf32>
    %18 = math.erf %17 : vector<16x128xf32>
    %cst_13 = arith.constant 1.000000e+00 : f32
    %19 = vector.broadcast %cst_13 : f32 to vector<16x128xf32>
    %20 = arith.addf %19, %18 : vector<16x128xf32>
    %21 = arith.mulf %15, %20 : vector<16x128xf32>
    %22 = arith.truncf %21 : vector<16x128xf32> to vector<16x128xbf16>
    %c0_14 = arith.constant 0 : index
    %c0_15 = arith.constant 0 : index
    %23 = vector.load %arg6[%c0_14, %c0_15] : memref<128x32xbf16, #tpu.memory_space<vmem>>, vector<128x32xbf16>
    %cst_16 = arith.constant dense<0.000000e+00> : vector<16x32xf32>
    %24 = tpu.matmul %22, %23, %cst_16 {dimension_numbers = #tpu.dot_dimension_numbers<[1], [0], [0], [1], [0, 0, 1, 1], [], []>} : vector<16x128xbf16>, vector<128x32xbf16>, vector<16x32xf32> -> vector<16x32xf32>
    %c0_17 = arith.constant 0 : index
    %c0_18 = arith.constant 0 : index
    %25 = vector.load %arg7[%c0_17, %c0_18] : memref<1x32xf32, #tpu.memory_space<vmem>>, vector<1x32xf32>
    %26 = vector.broadcast %25 : vector<1x32xf32> to vector<16x32xf32>
    %27 = arith.addf %24, %26 : vector<16x32xf32>
    %c0_19 = arith.constant 0 : index
    %c0_20 = arith.constant 0 : index
    %28 = vector.load %arg8[%c0_19, %c0_20] : memref<1x32xf32, #tpu.memory_space<vmem>>, vector<1x32xf32>
    %29 = vector.broadcast %28 : vector<1x32xf32> to vector<16x32xf32>
    %30 = arith.mulf %29, %27 : vector<16x32xf32>
    %c0_21 = arith.constant 0 : index
    %c0_22 = arith.constant 0 : index
    %31 = vector.load %arg9[%c0_21, %c0_22] : memref<1x32xf32, #tpu.memory_space<vmem>>, vector<1x32xf32>
    %32 = vector.broadcast %31 : vector<1x32xf32> to vector<16x32xf32>
    %33 = arith.addf %30, %32 : vector<16x32xf32>
    %c0_23 = arith.constant 0 : index
    %c0_24 = arith.constant 0 : index
    %34 = vector.load %arg11[%c0_23, %c0_24] : memref<16x32xf32, #tpu.memory_space<vmem>>, vector<16x32xf32>
    %35 = arith.addf %33, %34 : vector<16x32xf32>
    %c0_25 = arith.constant 0 : index
    %c0_26 = arith.constant 0 : index
    %36 = vector.load %arg10[%c0_25, %c0_26] : memref<16x32xf32, #tpu.memory_space<vmem>>, vector<16x32xf32>
    tpu.vector_store %arg10[%c0_25, %c0_26], %35 {strides = array<i32>} : memref<16x32xf32, #tpu.memory_space<vmem>>, vector<16x32xf32>,
    return
  }
  func.func @transform_0(%arg0: i32) -> (i32, i32) {
    %c0_i32 = arith.constant 0 : i32
    %c0_i32_0 = arith.constant 0 : i32
    return %arg0, %c0_i32 : i32, i32
  }
  func.func @transform_1(%arg0: i32) -> (i32, i32) {
    %c0_i32 = arith.constant 0 : i32
    %c0_i32_0 = arith.constant 0 : i32
    %c0_i32_1 = arith.constant 0 : i32
    return %c0_i32, %c0_i32_0 : i32, i32
  }
  func.func @transform_2(%arg0: i32) -> (i32, i32) {
    %c0_i32 = arith.constant 0 : i32
    %c0_i32_0 = arith.constant 0 : i32
    %c0_i32_1 = arith.constant 0 : i32
    return %c0_i32, %c0_i32_0 : i32, i32
  }
  func.func @transform_3(%arg0: i32) -> (i32, i32) {
    %c0_i32 = arith.constant 0 : i32
    %c0_i32_0 = arith.constant 0 : i32
    %c0_i32_1 = arith.constant 0 : i32
    return %c0_i32, %c0_i32_0 : i32, i32
  }
  func.func @transform_4(%arg0: i32) -> (i32, i32) {
    %c0_i32 = arith.constant 0 : i32
    %c0_i32_0 = arith.constant 0 : i32
    %c0_i32_1 = arith.constant 0 : i32
    return %c0_i32, %c0_i32_0 : i32, i32
  }
  func.func @transform_5(%arg0: i32) -> (i32, i32) {
    %c0_i32 = arith.constant 0 : i32
    %c0_i32_0 = arith.constant 0 : i32
    %c0_i32_1 = arith.constant 0 : i32
    return %c0_i32, %c0_i32_0 : i32, i32
  }
  func.func @transform_6(%arg0: i32) -> (i32, i32) {
    %c0_i32 = arith.constant 0 : i32
    %c0_i32_0 = arith.constant 0 : i32
    %c0_i32_1 = arith.constant 0 : i32
    return %c0_i32, %c0_i32_0 : i32, i32
  }
  func.func @transform_7(%arg0: i32) -> (i32, i32) {
    %c0_i32 = arith.constant 0 : i32
    %c0_i32_0 = arith.constant 0 : i32
    %c0_i32_1 = arith.constant 0 : i32
    return %c0_i32, %c0_i32_0 : i32, i32
  }
  func.func @transform_8(%arg0: i32) -> (i32, i32) {
    %c0_i32 = arith.constant 0 : i32
    %c0_i32_0 = arith.constant 0 : i32
    %c0_i32_1 = arith.constant 0 : i32
    return %c0_i32, %c0_i32_0 : i32, i32
  }
  func.func @transform_9(%arg0: i32) -> (i32, i32) {
    %c0_i32 = arith.constant 0 : i32
    %c0_i32_0 = arith.constant 0 : i32
    return %arg0, %c0_i32 : i32, i32
  }
}

</mosaic_0001>

<llo_original>
// kernel: tpu_custom_call.1
$region0: #{tpu_custom_call.1}
  #allocation0 [shape = 'u32[]', space=smem, size = 0x4, offset = 0x4, fixed_abs, tag = 'smem constant byte address 0x4 - core index']
  #allocation1 [shape = 'u32[144,128]{1,0:T(1,128)}', space=vmem, size = 0x12000, scoped, tag = 'internal scratch']
  #allocation2 [shape = 'f32[16,32]{1,0:T(8,128)}', space=vmem, size = 0x2000, scoped, tag = 'scratch operand']
  %s0 = inlined_call_operand.hbm [shape: f32[16,32], index: 0, kind: input, shape index: {}]
  %s1 = inlined_call_operand.hbm [shape: f32[1,32], index: 1, kind: input, shape index: {}]
  %s2 = inlined_call_operand.hbm [shape: f32[1,32], index: 2, kind: input, shape index: {}]
  %s3 = inlined_call_operand.hbm [shape: bf16[32,128], index: 3, kind: input, shape index: {}]
  %s4 = inlined_call_operand.hbm [shape: f32[1,128], index: 4, kind: input, shape index: {}]
  %s5 = inlined_call_operand.hbm [shape: bf16[128,32], index: 5, kind: input, shape index: {}]
  %s6 = inlined_call_operand.hbm [shape: f32[1,32], index: 6, kind: input, shape index: {}]
  %s7 = inlined_call_operand.hbm [shape: f32[1,32], index: 7, kind: input, shape index: {}]
  %s8 = inlined_call_operand.hbm [shape: f32[1,32], index: 8, kind: input, shape index: {}]
  %s9 = inlined_call_operand.hbm [shape: f32[16,32], index: 9, kind: output, shape index: {}]
  %s10 = sld [smem:[#allocation0]]
  $region82: #{tpu_custom_call.1} parent=0
    _
  %s12 = ssub.s32 1, %s10
  %s13 = scalar_select 0, %s12, %s10
  $region1: #{tpu_custom_call.1} parent=0
    #allocation3 [shape = 'u8[8192]{0}', space=vmem, size = 0x2000, scoped, tag = 'input window, operand 0, single buffered']
    #allocation4 [shape = 's32[1]{0}', space=sflag, size = 0x4, scoped, tag = 'scoped memory for tpu_custom_call.1']
    #allocation5 [shape = 's32[1]{0}', space=sflag, size = 0x4, scoped, tag = 'scoped memory for tpu_custom_call.1']
    #allocation6 [shape = 'u8[512]{0}', space=vmem, size = 0x400, scoped, tag = 'input window, operand 1, single buffered']
    #allocation7 [shape = 's32[1]{0}', space=sflag, size = 0x4, scoped, tag = 'scoped memory for tpu_custom_call.1']
    #allocation8 [shape = 'u8[512]{0}', space=vmem, size = 0x400, scoped, tag = 'input window, operand 2, single buffered']
    #allocation9 [shape = 'u8[8192]{0}', space=vmem, size = 0x2000, scoped, tag = 'input window, operand 3, single buffered']
    #allocation10 [shape = 's32[1]{0}', space=sflag, size = 0x4, scoped, tag = 'scoped memory for tpu_custom_call.1']
    #allocation11 [shape = 'u8[512]{0}', space=vmem, size = 0x400, scoped, tag = 'input window, operand 4, single buffered']
    #allocation12 [shape = 'u8[32768]{0}', space=vmem, size = 0x8000, scoped, tag = 'input window, operand 5, single buffered']
    #allocation13 [shape = 's32[1]{0}', space=sflag, size = 0x4, scoped, tag = 'scoped memory for tpu_custom_call.1']
    #allocation14 [shape = 'u8[512]{0}', space=vmem, size = 0x400, scoped, tag = 'input window, operand 6, single buffered']
    #allocation15 [shape = 'u8[512]{0}', space=vmem, size = 0x400, scoped, tag = 'input window, operand 7, single buffered']
    #allocation16 [shape = 's32[1]{0}', space=sflag, size = 0x4, scoped, tag = 'scoped memory for tpu_custom_call.1']
    #allocation17 [shape = 'u8[512]{0}', space=vmem, size = 0x400, scoped, tag = 'input window, operand 8, single buffered']
    #allocation18 [shape = 'u8[8192]{0}', space=vmem, size = 0x2000, scoped, tag = 'output window, operand 0, single buffered']
    %14 = vsyncpa [#allocation4], 0
    %15 = vsyncpa [#allocation7], 0
    %16 = vsyncpa [#allocation10], 0
    %17 = vsyncpa [#allocation13], 0
    %18 = vsyncpa [#allocation16], 0
    %19 = vsyncpa [#allocation5], 0
    // Predicated region
    $region2: #{tpu_custom_call.1} parent=1 // pred_check
      _
    $region3: #{tpu_custom_call.1} parent=1 // pred_check_branch
      %21 = sbr.rel (0) target = $region5
    $region4: #{tpu_custom_call.1} parent=1 // pred_region
      %s23 = ssub.s32 256, 256
      %24 = vsyncadd [#allocation4], %s23
      %s25 = sshll.u32 [#allocation3], 4
      %s26 = int_to_ptr.vmem [resolvable:$true] %s25
      %31 = dma.hbm_to_vmem [thread:$0]  %s0, 256, %s26, [#allocation4], 128, 128, 8
    $region5: #{tpu_custom_call.1} parent=1 // pred_fallthru
      _
    // Predicated region
    $region6: #{tpu_custom_call.1} parent=1 // pred_check
      _
    $region7: #{tpu_custom_call.1} parent=1 // pred_check_branch
      %33 = sbr.rel (0) target = $region9
    $region8: #{tpu_custom_call.1} parent=1 // pred_region
      %s35 = ssub.s32 16, 16
      %36 = vsyncadd [#allocation7], %s35
      %s38 = sshll.u32 [#allocation6], 4
      %s39 = int_to_ptr.vmem [resolvable:$true] %s38
      %41 = dma.hbm_to_vmem [thread:$0]  %s1, 16, %s39, [#allocation7]
    $region9: #{tpu_custom_call.1} parent=1 // pred_fallthru
      _
    // Predicated region
    $region10: #{tpu_custom_call.1} parent=1 // pred_check
      _
    $region11: #{tpu_custom_call.1} parent=1 // pred_check_branch
      %43 = sbr.rel (0) target = $region13
    $region12: #{tpu_custom_call.1} parent=1 // pred_region
      %s45 = ssub.s32 16, 16
      %46 = vsyncadd [#allocation7], %s45
      %s48 = sshll.u32 [#allocation8], 4
      %s49 = int_to_ptr.vmem [resolvable:$true] %s48
      %51 = dma.hbm_to_vmem [thread:$0]  %s2, 16, %s49, [#allocation7]
    $region13: #{tpu_custom_call.1} parent=1 // pred_fallthru
      _
    // Predicated region
    $region14: #{tpu_custom_call.1} parent=1 // pred_check
      _
    $region15: #{tpu_custom_call.1} parent=1 // pred_check_branch
      %53 = sbr.rel (0) target = $region17
    $region16: #{tpu_custom_call.1} parent=1 // pred_region
      %s55 = ssub.s32 256, 256
      %56 = vsyncadd [#allocation10], %s55
      %s57 = sshll.u32 [#allocation9], 4
      %s58 = int_to_ptr.vmem [resolvable:$true] %s57
      %63 = dma.hbm_to_vmem [thread:$0]  %s3, 256, %s58, [#allocation10], 64, 64, 4
    $region17: #{tpu_custom_call.1} parent=1 // pred_fallthru
      _
    // Predicated region
    $region18: #{tpu_custom_call.1} parent=1 // pred_check
      _
    $region19: #{tpu_custom_call.1} parent=1 // pred_check_branch
      %65 = sbr.rel (0) target = $region21
    $region20: #{tpu_custom_call.1} parent=1 // pred_region
      %s67 = ssub.s32 16, 16
      %68 = vsyncadd [#allocation10], %s67
      %s70 = sshll.u32 [#allocation11], 4
      %s71 = int_to_ptr.vmem [resolvable:$true] %s70
      %73 = dma.hbm_to_vmem [thread:$0]  %s4, 16, %s71, [#allocation10]
    $region21: #{tpu_custom_call.1} parent=1 // pred_fallthru
      _
    // Predicated region
    $region22: #{tpu_custom_call.1} parent=1 // pred_check
      _
    $region23: #{tpu_custom_call.1} parent=1 // pred_check_branch
      %75 = sbr.rel (0) target = $region25
    $region24: #{tpu_custom_call.1} parent=1 // pred_region
      %s77 = ssub.s32 1024, 1024
      %78 = vsyncadd [#allocation13], %s77
      %s79 = sshll.u32 [#allocation12], 4
      %s80 = int_to_ptr.vmem [resolvable:$true] %s79
      %85 = dma.hbm_to_vmem [thread:$0]  %s5, 1024, %s80, [#allocation13], 64, 64, 4
    $region25: #{tpu_custom_call.1} parent=1 // pred_fallthru
      _
    // Predicated region
    $region26: #{tpu_custom_call.1} parent=1 // pred_check
      _
    $region27: #{tpu_custom_call.1} parent=1 // pred_check_branch
      %87 = sbr.rel (0) target = $region29
    $region28: #{tpu_custom_call.1} parent=1 // pred_region
      %s89 = ssub.s32 16, 16
      %90 = vsyncadd [#allocation13], %s89
      %s92 = sshll.u32 [#allocation14], 4
      %s93 = int_to_ptr.vmem [resolvable:$true] %s92
      %95 = dma.hbm_to_vmem [thread:$0]  %s6, 16, %s93, [#allocation13]
    $region29: #{tpu_custom_call.1} parent=1 // pred_fallthru
      _
    // Predicated region
    $region30: #{tpu_custom_call.1} parent=1 // pred_check
      _
    $region31: #{tpu_custom_call.1} parent=1 // pred_check_branch
      %97 = sbr.rel (0) target = $region33
    $region32: #{tpu_custom_call.1} parent=1 // pred_region
      %s99 = ssub.s32 16, 16
      %100 = vsyncadd [#allocation16], %s99
      %s102 = sshll.u32 [#allocation15], 4
      %s103 = int_to_ptr.vmem [resolvable:$true] %s102
      %105 = dma.hbm_to_vmem [thread:$0]  %s7, 16, %s103, [#allocation16]
    $region33: #{tpu_custom_call.1} parent=1 // pred_fallthru
      _
    // Predicated region
    $region34: #{tpu_custom_call.1} parent=1 // pred_check
      _
    $region35: #{tpu_custom_call.1} parent=1 // pred_check_branch
      %107 = sbr.rel (0) target = $region37
    $region36: #{tpu_custom_call.1} parent=1 // pred_region
      %s109 = ssub.s32 16, 16
      %110 = vsyncadd [#allocation16], %s109
      %s112 = sshll.u32 [#allocation17], 4
      %s113 = int_to_ptr.vmem [resolvable:$true] %s112
      %115 = dma.hbm_to_vmem [thread:$0]  %s8, 16, %s113, [#allocation16]
    $region37: #{tpu_custom_call.1} parent=1 // pred_fallthru
      _
    // Predicated region
    $region38: #{tpu_custom_call.1} parent=1 // pred_check
      _
    $region39: #{tpu_custom_call.1} parent=1 // pred_check_branch
      %117 = sbr.rel (0) target = $region41
    $region40: #{tpu_custom_call.1} parent=1 // pred_region
      %118 = dma.done [#allocation4], 256
    $region41: #{tpu_custom_call.1} parent=1 // pred_fallthru
      _
    // Predicated region
    $region42: #{tpu_custom_call.1} parent=1 // pred_check
      _
    $region43: #{tpu_custom_call.1} parent=1 // pred_check_branch
      %120 = sbr.rel (0) target = $region45
    $region44: #{tpu_custom_call.1} parent=1 // pred_region
      %121 = dma.done [#allocation7], 16
    $region45: #{tpu_custom_call.1} parent=1 // pred_fallthru
      _
    // Predicated region
    $region46: #{tpu_custom_call.1} parent=1 // pred_check
      _
    $region47: #{tpu_custom_call.1} parent=1 // pred_check_branch
      %123 = sbr.rel (0) target = $region49
    $region48: #{tpu_custom_call.1} parent=1 // pred_region
      %124 = dma.done [#allocation7], 16
    $region49: #{tpu_custom_call.1} parent=1 // pred_fallthru
      _
    // Predicated region
    $region50: #{tpu_custom_call.1} parent=1 // pred_check
      _
    $region51: #{tpu_custom_call.1} parent=1 // pred_check_branch
      %126 = sbr.rel (0) target = $region53
    $region52: #{tpu_custom_call.1} parent=1 // pred_region
      %127 = dma.done [#allocation10], 256
    $region53: #{tpu_custom_call.1} parent=1 // pred_fallthru
      _
    // Predicated region
    $region54: #{tpu_custom_call.1} parent=1 // pred_check
      _
    $region55: #{tpu_custom_call.1} parent=1 // pred_check_branch
      %129 = sbr.rel (0) target = $region57
    $region56: #{tpu_custom_call.1} parent=1 // pred_region
      %130 = dma.done [#allocation10], 16
    $region57: #{tpu_custom_call.1} parent=1 // pred_fallthru
      _
    // Predicated region
    $region58: #{tpu_custom_call.1} parent=1 // pred_check
      _
    $region59: #{tpu_custom_call.1} parent=1 // pred_check_branch
      %132 = sbr.rel (0) target = $region61
    $region60: #{tpu_custom_call.1} parent=1 // pred_region
      %133 = dma.done [#allocation13], 1024
    $region61: #{tpu_custom_call.1} parent=1 // pred_fallthru
      _
    // Predicated region
    $region62: #{tpu_custom_call.1} parent=1 // pred_check
      _
    $region63: #{tpu_custom_call.1} parent=1 // pred_check_branch
      %135 = sbr.rel (0) target = $region65
    $region64: #{tpu_custom_call.1} parent=1 // pred_region
      %136 = dma.done [#allocation13], 16
    $region65: #{tpu_custom_call.1} parent=1 // pred_fallthru
      _
    // Predicated region
    $region66: #{tpu_custom_call.1} parent=1 // pred_check
      _
    $region67: #{tpu_custom_call.1} parent=1 // pred_check_branch
      %138 = sbr.rel (0) target = $region69
    $region68: #{tpu_custom_call.1} parent=1 // pred_region
      %139 = dma.done [#allocation16], 16
    $region69: #{tpu_custom_call.1} parent=1 // pred_fallthru
      _
    // Predicated region
    $region70: #{tpu_custom_call.1} parent=1 // pred_check
      _
    $region71: #{tpu_custom_call.1} parent=1 // pred_check_branch
      %141 = sbr.rel (0) target = $region73
    $region72: #{tpu_custom_call.1} parent=1 // pred_region
      %142 = dma.done [#allocation16], 16
    $region73: #{tpu_custom_call.1} parent=1 // pred_fallthru
      _
    %v144 = vld [vmem:[#allocation6] sm:$0x1]
    %v145 = vld [vmem:[#allocation3] sm:$0xff]
    %v146 = vld [vmem:[#allocation3 + $0x8] sm:$0xff]
    %v148 = vlaneseq
    %v149 = vshrl.u32 %v148, 7
    %v150 = vsub.s32 0, %v149
    %v151 = vrot.slane %v144, %v150
    %v153 = vmul.f32 %v151, %v145
    %v154 = vmul.f32 %v151, %v146
    %v155 = vld [vmem:[#allocation8] sm:$0x1]
    %v157 = vlaneseq
    %v158 = vshrl.u32 %v157, 7
    %v159 = vsub.s32 0, %v158
    %v160 = vrot.slane %v155, %v159
    %v162 = vadd.f32 %v153, %v160
    %v163 = vadd.f32 %v154, %v160
    %vm164 = vcmask 261120
    %165 = vst.msk [vmem:[#allocation2] sm:$0xff] %vm164, %v162
    %166 = vst.msk [vmem:[#allocation2 + $0x8] sm:$0xff] %vm164, %v163
    %v167 = vpack.c.bf16 %v163, %v162
    %v168 = vld [vmem:[#allocation9] sm:$0xf]
    %v169 = vld [vmem:[#allocation9 + $0x4] sm:$0xf]
    %v170 = vld [vmem:[#allocation9 + $0x8] sm:$0xf]
    %v171 = vld [vmem:[#allocation9 + $0xc] sm:$0xf]
    %v172 = vld [vmem:[#allocation11] sm:$0x1]
    %v174 = vlaneseq
    %v175 = vshrl.u32 %v174, 7
    %v176 = vsub.s32 0, %v175
    %v177 = vrot.slane %v172, %v176
    %v183 = vunpack.c.l.b16 %v168
    %v184 = vunpack.c.l.b16 %v169
    %v185 = vunpack.c.l.b16 %v170
    %v186 = vunpack.c.l.b16 %v171
    %v187 = vpack.c.b16 %v184, %v183
    %v188 = vpack.c.b16 %v186, %v185
    %v192 = vsel %vm164, %v167, 0
    %194 = vmatprep.subr.bf16.mxu0 0
    %195 = vmatpush1.bf16.msra.mxu0 %v187
    %196 = vmatprep.subr.bf16.mxu0 0
    %197 = vmatpush1.bf16.msra.mxu0 %v188
    %198 = vmatprep.subr.bf16.mxu0 0
    %199 = vmatpush1.bf16.msra.mxu0 0
    %200 = vmatprep.subr.bf16.mxu0 0
    %201 = vmatpush1.bf16.msra.mxu0 0
    %202 = vmatprep.subr.bf16.mxu0 0
    %203 = vmatpush1.bf16.msra.mxu0 0
    %204 = vmatprep.subr.bf16.mxu0 0
    %205 = vmatpush1.bf16.msra.mxu0 0
    %206 = vmatprep.subr.bf16.mxu0 0
    %207 = vmatpush1.bf16.msra.mxu0 0
    %208 = vmatprep.subr.bf16.mxu0 0
    %209 = vmatpush1.bf16.msra.mxu0 0
    %210 = vmatprep.subr.bf16.mxu0 0
    %211 = vmatpush1.bf16.msra.mxu0 0
    %212 = vmatprep.subr.bf16.mxu0 0
    %213 = vmatpush1.bf16.msra.mxu0 0
    %214 = vmatprep.subr.bf16.mxu0 0
    %215 = vmatpush1.bf16.msra.mxu0 0
    %216 = vmatprep.subr.bf16.mxu0 0
    %217 = vmatpush1.bf16.msra.mxu0 0
    %218 = vmatprep.subr.bf16.mxu0 0
    %219 = vmatpush1.bf16.msra.mxu0 0
    %220 = vmatprep.subr.bf16.mxu0 0
    %221 = vmatpush1.bf16.msra.mxu0 0
    %222 = vmatprep.subr.bf16.mxu0 0
    %223 = vmatpush1.bf16.msra.mxu0 0
    %224 = vmatprep.subr.bf16.mxu0 0
    %225 = vmatpush1.bf16.msra.mxu0 0
    %226 = vmatprep.mubr.bf16.mxu0 0
    %227 = vmatmul.mubr.bf16.gmra.mrb[0].mxu0 %v192
    %v228 = vpop.f32.mrb[0].mxu0
    %v229 = vadd.f32 %v177, %v228
    %v230 = vpop.f32.mrb[0].mxu0
    %v231 = vpop.f32.mrb[0].mxu0
    %v232 = vadd.f32 %v177, %v231
    %v233 = vpop.f32.mrb[0].mxu0
    %234 = vdwg.mxu0
    %v235 = vmul.f32 %v229, 0.5
    %v236 = vmul.f32 %v232, 0.5
    %v237 = vmul.f32 %v229, 0.70710677
    %v238 = vmul.f32 %v232, 0.70710677
    %v239 = verf.f32.pop %v237
    %v240 = verf.f32.pop %v238
    %v241 = vadd.f32 %v239, 1.0
    %v242 = vadd.f32 %v240, 1.0
    %v243 = vmul.f32 %v235, %v241
    %v244 = vmul.f32 %v236, %v242
    %v245 = vpack.c.bf16 %v244, %v243
    %v246 = vld [vmem:[#allocation12] sm:$0xf]
    %v247 = vld [vmem:[#allocation12 + $0x4] sm:$0xf]
    %v248 = vld [vmem:[#allocation12 + $0x8] sm:$0xf]
    %v249 = vld [vmem:[#allocation12 + $0xc] sm:$0xf]
    %v250 = vld [vmem:[#allocation12 + $0x10] sm:$0xf]
    %v251 = vld [vmem:[#allocation12 + $0x14] sm:$0xf]
    %v252 = vld [vmem:[#allocation12 + $0x18] sm:$0xf]
    %v253 = vld [vmem:[#allocation12 + $0x1c] sm:$0xf]
    %v254 = vld [vmem:[#allocation12 + $0x20] sm:$0xf]
    %v255 = vld [vmem:[#allocation12 + $0x24] sm:$0xf]
    %v256 = vld [vmem:[#allocation12 + $0x28] sm:$0xf]
    %v257 = vld [vmem:[#allocation12 + $0x2c] sm:$0xf]
    %v258 = vld [vmem:[#allocation12 + $0x30] sm:$0xf]
    %v259 = vld [vmem:[#allocation12 + $0x34] sm:$0xf]
    %v260 = vld [vmem:[#allocation12 + $0x38] sm:$0xf]
    %v261 = vld [vmem:[#allocation12 + $0x3c] sm:$0xf]
    %v262 = vld [vmem:[#allocation14] sm:$0x1]
    %v264 = vlaneseq
    %v265 = vshrl.u32 %v264, 7
    %v266 = vsub.s32 0, %v265
    %v267 = vrot.slane %v262, %v266
    %v285 = vunpack.c.l.b16 %v246
    %v286 = vunpack.c.l.b16 %v247
    %v287 = vunpack.c.l.b16 %v248
    %v288 = vunpack.c.l.b16 %v249
    %v289 = vunpack.c.l.b16 %v250
    %v290 = vunpack.c.l.b16 %v251
    %v291 = vunpack.c.l.b16 %v252
    %v292 = vunpack.c.l.b16 %v253
    %v293 = vunpack.c.l.b16 %v254
    %v294 = vunpack.c.l.b16 %v255
    %v295 = vunpack.c.l.b16 %v256
    %v296 = vunpack.c.l.b16 %v257
    %v297 = vunpack.c.l.b16 %v258
    %v298 = vunpack.c.l.b16 %v259
    %v299 = vunpack.c.l.b16 %v260
    %v300 = vunpack.c.l.b16 %v261
    %v301 = vpack.c.b16 %v286, %v285
    %v302 = vpack.c.b16 %v288, %v287
    %v303 = vpack.c.b16 %v290, %v289
    %v304 = vpack.c.b16 %v292, %v291
    %v305 = vpack.c.b16 %v294, %v293
    %v306 = vpack.c.b16 %v296, %v295
    %v307 = vpack.c.b16 %v298, %v297
    %v308 = vpack.c.b16 %v300, %v299
    %317 = vmatprep.subr.bf16.mxu0 0
    %318 = vmatpush1.bf16.msra.mxu0 %v301
    %319 = vmatprep.subr.bf16.mxu0 0
    %320 = vmatpush1.bf16.msra.mxu0 %v302
    %321 = vmatprep.subr.bf16.mxu0 0
    %322 = vmatpush1.bf16.msra.mxu0 %v303
    %323 = vmatprep.subr.bf16.mxu0 0
    %324 = vmatpush1.bf16.msra.mxu0 %v304
    %325 = vmatprep.subr.bf16.mxu0 0
    %326 = vmatpush1.bf16.msra.mxu0 %v305
    %327 = vmatprep.subr.bf16.mxu0 0
    %328 = vmatpush1.bf16.msra.mxu0 %v306
    %329 = vmatprep.subr.bf16.mxu0 0
    %330 = vmatpush1.bf16.msra.mxu0 %v307
    %331 = vmatprep.subr.bf16.mxu0 0
    %332 = vmatpush1.bf16.msra.mxu0 %v308
    %333 = vmatprep.subr.bf16.mxu0 0
    %334 = vmatpush1.bf16.msra.mxu0 0
    %335 = vmatprep.subr.bf16.mxu0 0
    %336 = vmatpush1.bf16.msra.mxu0 0
    %337 = vmatprep.subr.bf16.mxu0 0
    %338 = vmatpush1.bf16.msra.mxu0 0
    %339 = vmatprep.subr.bf16.mxu0 0
    %340 = vmatpush1.bf16.msra.mxu0 0
    %341 = vmatprep.subr.bf16.mxu0 0
    %342 = vmatpush1.bf16.msra.mxu0 0
    %343 = vmatprep.subr.bf16.mxu0 0
    %344 = vmatpush1.bf16.msra.mxu0 0
    %345 = vmatprep.subr.bf16.mxu0 0
    %346 = vmatpush1.bf16.msra.mxu0 0
    %347 = vmatprep.subr.bf16.mxu0 0
    %348 = vmatpush1.bf16.msra.mxu0 0
    %349 = vmatprep.mubr.bf16.mxu0 0
    %350 = vmatmul.mubr.bf16.gmra.mrb[0].mxu0 %v245
    %v351 = vpop.f32.mrb[0].mxu0
    %v352 = vadd.f32 %v267, %v351
    %v353 = vpop.f32.mrb[0].mxu0
    %v354 = vpop.f32.mrb[0].mxu0
    %v355 = vadd.f32 %v267, %v354
    %v356 = vpop.f32.mrb[0].mxu0
    %357 = vdwg.mxu0
    %v358 = vld [vmem:[#allocation15] sm:$0x1]
    %v360 = vlaneseq
    %v361 = vshrl.u32 %v360, 7
    %v362 = vsub.s32 0, %v361
    %v363 = vrot.slane %v358, %v362
    %v365 = vmul.f32 %v363, %v352
    %v366 = vmul.f32 %v363, %v355
    %v367 = vld [vmem:[#allocation17] sm:$0x1]
    %v369 = vlaneseq
    %v370 = vshrl.u32 %v369, 7
    %v371 = vsub.s32 0, %v370
    %v372 = vrot.slane %v367, %v371
    %v374 = vadd.f32 %v365, %v372
    %v375 = vadd.f32 %v366, %v372
    %v376 = vld [vmem:[#allocation2] sm:$0xff]
    %v377 = vld [vmem:[#allocation2 + $0x8] sm:$0xff]
    %v378 = vadd.f32 %v374, %v376
    %v379 = vadd.f32 %v375, %v377
    %380 = vst.msk [vmem:[#allocation18] sm:$0xff] %vm164, %v378
    %381 = vst.msk [vmem:[#allocation18 + $0x8] sm:$0xff] %vm164, %v379
    // Predicated region
    $region74: #{tpu_custom_call.1} parent=1 // pred_check
      _
    $region75: #{tpu_custom_call.1} parent=1 // pred_check_branch
      %383 = sbr.rel (0) target = $region77
    $region76: #{tpu_custom_call.1} parent=1 // pred_region
      %s385 = ssub.s32 256, 256
      %386 = vsyncadd [#allocation5], %s385
      %s387 = sshll.u32 [#allocation18], 4
      %s388 = int_to_ptr.vmem [resolvable:$true] %s387
      %393 = dma.vmem_to_hbm [thread:$0]  %s388, 256, %s9, [#allocation5], 128, 128, 8
    $region77: #{tpu_custom_call.1} parent=1 // pred_fallthru
      _
    // Predicated region
    $region78: #{tpu_custom_call.1} parent=1 // pred_check
      _
    $region79: #{tpu_custom_call.1} parent=1 // pred_check_branch
      %395 = sbr.rel (0) target = $region81
    $region80: #{tpu_custom_call.1} parent=1 // pred_region
      %396 = dma.done [#allocation5], 256
    $region81: #{tpu_custom_call.1} parent=1 // pred_fallthru
      _
    %397 = vsyncpa [#allocation4], 1
    %398 = vsyncpa [#allocation7], 1
    %399 = vsyncpa [#allocation10], 1
    %400 = vsyncpa [#allocation13], 1
    %401 = vsyncpa [#allocation16], 1
    %402 = vsyncpa [#allocation5], 1

</llo_original>
